<compile_context>
chip_gen: v7x
topology: tpu7x:2x2x1
jax: 0.10.0
libtpu: 0.0.40
codegen_flags: <defaults>
</compile_context>

<pallas_src>
import functools

import jax
import jax.numpy as jnp
from jax import lax
from jax.experimental import pallas as pl
from jax.experimental.pallas import tpu as pltpu


def _round_up(x, m):
    return ((x + m - 1) // m) * m


def _fc_kernel(x_ref, w_ref, b_ref, o_ref, *, apply_relu):
    """Fused (matmul -> bias -> ReLU) on one (batch tile, out tile).

    x_ref: [tm, in_sz]
    w_ref: [tn, in_sz]     (PyTorch layout, contracted on dim 1 -> no transpose)
    b_ref: [1, tn]
    o_ref: [tm, tn]
    """
    y = lax.dot_general(
        x_ref[...], w_ref[...],
        dimension_numbers=(((1,), (1,)), ((), ())),
        preferred_element_type=jnp.float32)
    y = y + b_ref[...]
    if apply_relu:
        y = jnp.maximum(y, 0.0)
    o_ref[...] = y.astype(o_ref.dtype)


def fc_layer_forward(x, weight, bias, *, bn_params=None, dropout=0.0,
                     actn="relu", tm=256, tn=256):
    """Pallas implementation of FCLayer.forward.

    Args:
      x:        [N, in_sz]
      weight:   [out_sz, in_sz]  (PyTorch nn.Linear convention)
      bias:     [out_sz]
      bn_params: optional (gamma, beta, eps) for BatchNorm1d in training mode
                 (batch statistics from x), folded into weight/bias in f32.
      dropout:  only p == 0 (no Dropout sublayer / eval identity) supported.
      actn:     "relu" or None.
      tm, tn:   batch / output-feature tile sizes (clamped & padded as needed).
    """
    N, in_sz = x.shape
    out_sz, in_sz_w = weight.shape
    assert in_sz == in_sz_w
    if dropout != 0.0:
        # TODO(synk): training-mode dropout needs in-kernel PRNG
        # (pltpu.prng_seed / pltpu.prng_random_bits); not exercised here.
        raise NotImplementedError("dropout > 0 not implemented")

    # ---- Fold BatchNorm1d (training-mode batch stats) into weight/bias ----
    # (x*scale + shift) @ W^T + b == x @ (W * scale)^T + (W @ shift + b)
    w_fold = weight.astype(jnp.float32)
    b_fold = bias.astype(jnp.float32)
    if bn_params is not None:
        gamma, beta, eps = bn_params
        xf = x.astype(jnp.float32)
        mean = jnp.mean(xf, axis=0)
        var = jnp.mean((xf - mean) ** 2, axis=0)   # biased batch variance
        inv_std = lax.rsqrt(var + eps)
        scale = gamma * inv_std                    # [in_sz]
        shift = beta - gamma * mean * inv_std      # [in_sz]
        b_fold = b_fold + w_fold @ shift           # uses un-scaled W
        w_fold = w_fold * scale[None, :]
    w_fold = w_fold.astype(weight.dtype)           # keep native (e.g. bf16) MXU input
    b_fold = b_fold.astype(jnp.float32)

    # ---- Tile sizing & padding (lane-dense, multiple-of-(8,128)) ----
    n_pad_min = _round_up(N, 8)
    tm_eff = min(tm, n_pad_min)
    tm_eff = _round_up(tm_eff, 8)
    N_pad = _round_up(N, tm_eff)

    o_pad_min = _round_up(out_sz, 128)
    tn_eff = min(tn, o_pad_min)
    tn_eff = _round_up(tn_eff, 128)
    out_pad = _round_up(out_sz, tn_eff)

    x_p = x if N_pad == N else jnp.pad(x, ((0, N_pad - N), (0, 0)))
    w_p = w_fold if out_pad == out_sz else jnp.pad(
        w_fold, ((0, out_pad - out_sz), (0, 0)))
    b_p = b_fold if out_pad == out_sz else jnp.pad(
        b_fold, (0, out_pad - out_sz))
    b_p = b_p.reshape(1, out_pad)

    kernel = functools.partial(_fc_kernel, apply_relu=(actn == "relu"))

    out = pl.pallas_call(
        kernel,
        out_shape=jax.ShapeDtypeStruct((N_pad, out_pad), x.dtype),
        grid_spec=pltpu.PrefetchScalarGridSpec(
            num_scalar_prefetch=0,
            grid=(N_pad // tm_eff, out_pad // tn_eff),
            in_specs=[
                pl.BlockSpec((tm_eff, in_sz), lambda i, j: (i, 0)),   # x tile
                pl.BlockSpec((tn_eff, in_sz), lambda i, j: (j, 0)),   # W tile (streamed)
                pl.BlockSpec((1, tn_eff), lambda i, j: (0, j)),       # folded bias
            ],
            out_specs=pl.BlockSpec((tm_eff, tn_eff), lambda i, j: (i, j)),
        ),
        compiler_params=pltpu.CompilerParams(
            dimension_semantics=("parallel", "parallel")),
    )(x_p, w_p, b_p)

    return out[:N, :out_sz]


if __name__ == "__main__":
    key = jax.random.PRNGKey(0)
    N, in_sz, out_sz = 16, 32, 64  # small demo shapes

    kx, kw, kb = jax.random.split(key, 3)
    x = jax.random.normal(kx, (N, in_sz), dtype=jnp.float32)
    # Deterministic parameter init (Kaiming-uniform-like bounds, like nn.Linear).
    bound = 1.0 / (in_sz ** 0.5)
    weight = jax.random.uniform(kw, (out_sz, in_sz), jnp.float32, -bound, bound)
    bias = jax.random.uniform(kb, (out_sz,), jnp.float32, -bound, bound)

    # Default FCLayer config: bn=False, dropout=0.0, actn=ReLU.
    out = jax.block_until_ready(fc_layer_forward(x, weight, bias))
    ref = jnp.maximum(x @ weight.T + bias, 0.0)
    assert out.shape == (N, out_sz)
    assert jnp.allclose(out, ref, atol=1e-5, rtol=1e-5), "mismatch vs reference"

    # bn=True path (BatchNorm folded into weights/bias in the wrapper).
    gamma = jnp.ones((in_sz,), jnp.float32) * 1.5
    beta = jnp.ones((in_sz,), jnp.float32) * 0.25
    eps = 1e-5
    out_bn = jax.block_until_ready(
        fc_layer_forward(x, weight, bias, bn_params=(gamma, beta, eps)))
    mean = jnp.mean(x, axis=0)
    var = jnp.mean((x - mean) ** 2, axis=0)
    xn = (x - mean) / jnp.sqrt(var + eps) * gamma + beta
    ref_bn = jnp.maximum(xn @ weight.T + bias, 0.0)
    assert jnp.allclose(out_bn, ref_bn, atol=1e-4, rtol=1e-4), "bn mismatch"

    # actn=None path (plain Linear).
    out_lin = jax.block_until_ready(
        fc_layer_forward(x, weight, bias, actn=None))
    assert jnp.allclose(out_lin, x @ weight.T + bias, atol=1e-5, rtol=1e-5)

    print("KERNEL_OK")
</pallas_src>

<mosaic_0001>
module attributes {stable_mosaic.version = 11 : i64} {
  func.func @_fc_kernel(%arg0: i32, %arg1: i32, %arg2: memref<16x32xf32, #tpu.memory_space<vmem>>, %arg3: memref<128x32xf32, #tpu.memory_space<vmem>>, %arg4: memref<1x128xf32, #tpu.memory_space<vmem>>, %arg5: memref<16x128xf32, #tpu.memory_space<vmem>>) attributes {dimension_semantics = [#tpu.dimension_semantics<parallel>, #tpu.dimension_semantics<parallel>], iteration_bounds = array<i64: 1, 1>, scalar_prefetch = 0 : i64, scratch_operands = 0 : i64, tpu.core_type = #tpu.core_type<tc>, window_params = [{transform_indices = @transform_0, window_bounds = array<i64: 16, 32>}, {transform_indices = @transform_1, window_bounds = array<i64: 128, 32>}, {transform_indices = @transform_2, window_bounds = array<i64: 1, 128>}, {transform_indices = @transform_3, window_bounds = array<i64: 16, 128>}]} {
    %c0 = arith.constant 0 : index
    %c0_0 = arith.constant 0 : index
    %0 = vector.load %arg2[%c0, %c0_0] : memref<16x32xf32, #tpu.memory_space<vmem>>, vector<16x32xf32>
    %c0_1 = arith.constant 0 : index
    %c0_2 = arith.constant 0 : index
    %1 = vector.load %arg3[%c0_1, %c0_2] : memref<128x32xf32, #tpu.memory_space<vmem>>, vector<128x32xf32>
    %cst = arith.constant dense<0.000000e+00> : vector<16x128xf32>
    %2 = tpu.matmul %0, %1, %cst {dimension_numbers = #tpu.dot_dimension_numbers<[1], [1], [0], [0], [0, 0, 1, 0], [], []>} : vector<16x32xf32>, vector<128x32xf32>, vector<16x128xf32> -> vector<16x128xf32>
    %c0_3 = arith.constant 0 : index
    %c0_4 = arith.constant 0 : index
    %3 = vector.load %arg4[%c0_3, %c0_4] : memref<1x128xf32, #tpu.memory_space<vmem>>, vector<1x128xf32>
    %4 = vector.broadcast %3 : vector<1x128xf32> to vector<16x128xf32>
    %5 = arith.addf %2, %4 : vector<16x128xf32>
    %cst_5 = arith.constant 0.000000e+00 : f32
    %6 = vector.broadcast %cst_5 : f32 to vector<16x128xf32>
    %7 = arith.maximumf %5, %6 : vector<16x128xf32>
    %c0_6 = arith.constant 0 : index
    %c0_7 = arith.constant 0 : index
    %8 = vector.load %arg5[%c0_6, %c0_7] : memref<16x128xf32, #tpu.memory_space<vmem>>, vector<16x128xf32>
    tpu.vector_store %arg5[%c0_6, %c0_7], %7 {strides = array<i32>} : memref<16x128xf32, #tpu.memory_space<vmem>>, vector<16x128xf32>,
    return
  }
  func.func @transform_0(%arg0: i32, %arg1: i32) -> (i32, i32) {
    %c0_i32 = arith.constant 0 : i32
    %c0_i32_0 = arith.constant 0 : i32
    return %arg0, %c0_i32 : i32, i32
  }
  func.func @transform_1(%arg0: i32, %arg1: i32) -> (i32, i32) {
    %c0_i32 = arith.constant 0 : i32
    %c0_i32_0 = arith.constant 0 : i32
    return %arg1, %c0_i32 : i32, i32
  }
  func.func @transform_2(%arg0: i32, %arg1: i32) -> (i32, i32) {
    %c0_i32 = arith.constant 0 : i32
    %c0_i32_0 = arith.constant 0 : i32
    return %c0_i32, %arg1 : i32, i32
  }
  func.func @transform_3(%arg0: i32, %arg1: i32) -> (i32, i32) {
    %c0_i32 = arith.constant 0 : i32
    return %arg0, %arg1 : i32, i32
  }
}

</mosaic_0001>

<llo_original>
// kernel: tpu_custom_call.1
$region0: #{tpu_custom_call.1}
  #allocation0 [shape = 'u32[]', space=smem, size = 0x4, offset = 0x4, fixed_abs, tag = 'smem constant byte address 0x4 - core index']
  #allocation1 [shape = 'u32[144,128]{1,0:T(1,128)}', space=vmem, size = 0x12000, scoped, tag = 'internal scratch']
  %s0 = inlined_call_operand.vmem [shape: f32[16,32], index: 0, kind: input, shape index: {}]
  %s1 = inlined_call_operand.vmem [shape: f32[128,32], index: 1, kind: input, shape index: {}]
  %s2 = inlined_call_operand.vmem [shape: f32[1,128], index: 2, kind: input, shape index: {}]
  %s3 = inlined_call_operand.hbm [shape: f32[16,128], index: 3, kind: output, shape index: {}]
  %s4 = sld [smem:[#allocation0]]
  $region22: #{tpu_custom_call.1} parent=0
    _
  %s6 = ssub.s32 1, %s4
  %s7 = scalar_select 0, %s6, %s4
  $region1: #{tpu_custom_call.1} parent=0
    #allocation2 [shape = 'u8[8192]{0}', space=vmem, size = 0x2000, scoped, tag = 'output window, operand 0, single buffered']
    #allocation3 [shape = 's32[1]{0}', space=sflag, size = 0x4, scoped, tag = 'scoped memory for tpu_custom_call.1']
    %8 = vsyncpa [#allocation3], 0
    // Predicated region
    $region2: #{tpu_custom_call.1} parent=1 // pred_check
      _
    $region3: #{tpu_custom_call.1} parent=1 // pred_check_branch
      %10 = sbr.rel (0) target = $region5
    $region4: #{tpu_custom_call.1} parent=1 // pred_region
      _
    $region5: #{tpu_custom_call.1} parent=1 // pred_fallthru
      _
    // Predicated region
    $region6: #{tpu_custom_call.1} parent=1 // pred_check
      _
    $region7: #{tpu_custom_call.1} parent=1 // pred_check_branch
      %12 = sbr.rel (0) target = $region9
    $region8: #{tpu_custom_call.1} parent=1 // pred_region
      _
    $region9: #{tpu_custom_call.1} parent=1 // pred_fallthru
      _
    // Predicated region
    $region10: #{tpu_custom_call.1} parent=1 // pred_check
      _
    $region11: #{tpu_custom_call.1} parent=1 // pred_check_branch
      %14 = sbr.rel (0) target = $region13
    $region12: #{tpu_custom_call.1} parent=1 // pred_region
      _
    $region13: #{tpu_custom_call.1} parent=1 // pred_fallthru
      _
    %v15 = vld [vmem:[%s0] sm:$0xff]
    %v16 = vld [vmem:[%s0 + $0x8] sm:$0xff]
    %v17 = vld [vmem:[%s1] sm:$0xff]
    %v18 = vld [vmem:[%s1 + $0x8] sm:$0xff]
    %v19 = vld [vmem:[%s1 + $0x10] sm:$0xff]
    %v20 = vld [vmem:[%s1 + $0x18] sm:$0xff]
    %v21 = vld [vmem:[%s1 + $0x20] sm:$0xff]
    %v22 = vld [vmem:[%s1 + $0x28] sm:$0xff]
    %v23 = vld [vmem:[%s1 + $0x30] sm:$0xff]
    %v24 = vld [vmem:[%s1 + $0x38] sm:$0xff]
    %v25 = vld [vmem:[%s1 + $0x40] sm:$0xff]
    %v26 = vld [vmem:[%s1 + $0x48] sm:$0xff]
    %v27 = vld [vmem:[%s1 + $0x50] sm:$0xff]
    %v28 = vld [vmem:[%s1 + $0x58] sm:$0xff]
    %v29 = vld [vmem:[%s1 + $0x60] sm:$0xff]
    %v30 = vld [vmem:[%s1 + $0x68] sm:$0xff]
    %v31 = vld [vmem:[%s1 + $0x70] sm:$0xff]
    %v32 = vld [vmem:[%s1 + $0x78] sm:$0xff]
    %v33 = vld [vmem:[%s2] sm:$0x1]
    %v35 = vlaneseq
    %v36 = vshrl.u32 %v35, 7
    %v37 = vsub.s32 0, %v36
    %v38 = vrot.slane %v33, %v37
    %vm40 = vcmask 261120
    %v42 = vsel %vm40, %v15, 0
    %v45 = vsel %vm40, %v16, 0
    %v48 = vsel %vm40, %v17, 0
    %v51 = vsel %vm40, %v18, 0
    %v54 = vsel %vm40, %v19, 0
    %v57 = vsel %vm40, %v20, 0
    %v60 = vsel %vm40, %v21, 0
    %v63 = vsel %vm40, %v22, 0
    %v66 = vsel %vm40, %v23, 0
    %v69 = vsel %vm40, %v24, 0
    %v72 = vsel %vm40, %v25, 0
    %v75 = vsel %vm40, %v26, 0
    %v78 = vsel %vm40, %v27, 0
    %v81 = vsel %vm40, %v28, 0
    %v84 = vsel %vm40, %v29, 0
    %v87 = vsel %vm40, %v30, 0
    %v90 = vsel %vm40, %v31, 0
    %v93 = vsel %vm40, %v32, 0
    %95 = vmatprep.subr.mxu0 0.0
    %96 = vmatpush1.xpose.msra.mxu0 %v48
    %97 = vmatprep.subr.mxu0 0.0
    %98 = vmatpush1.xpose.msra.mxu0 %v51
    %99 = vmatprep.subr.mxu0 0.0
    %100 = vmatpush1.xpose.msra.mxu0 %v54
    %101 = vmatprep.subr.mxu0 0.0
    %102 = vmatpush1.xpose.msra.mxu0 %v57
    %103 = vmatprep.subr.mxu0 0.0
    %104 = vmatpush1.xpose.msra.mxu0 %v60
    %105 = vmatprep.subr.mxu0 0.0
    %106 = vmatpush1.xpose.msra.mxu0 %v63
    %107 = vmatprep.subr.mxu0 0.0
    %108 = vmatpush1.xpose.msra.mxu0 %v66
    %109 = vmatprep.subr.mxu0 0.0
    %110 = vmatpush1.xpose.msra.mxu0 %v69
    %111 = vmatprep.subr.mxu0 0.0
    %112 = vmatpush1.xpose.msra.mxu0 %v72
    %113 = vmatprep.subr.mxu0 0.0
    %114 = vmatpush1.xpose.msra.mxu0 %v75
    %115 = vmatprep.subr.mxu0 0.0
    %116 = vmatpush1.xpose.msra.mxu0 %v78
    %117 = vmatprep.subr.mxu0 0.0
    %118 = vmatpush1.xpose.msra.mxu0 %v81
    %119 = vmatprep.subr.mxu0 0.0
    %120 = vmatpush1.xpose.msra.mxu0 %v84
    %121 = vmatprep.subr.mxu0 0.0
    %122 = vmatpush1.xpose.msra.mxu0 %v87
    %123 = vmatprep.subr.mxu0 0.0
    %124 = vmatpush1.xpose.msra.mxu0 %v90
    %125 = vmatprep.subr.mxu0 0.0
    %126 = vmatpush1.xpose.msra.mxu0 %v93
    %127 = vmatprep.subr.mxu0 0.0
    %128 = vmatpush1.xpose.msra.mxu0 0.0
    %129 = vmatprep.subr.mxu0 0.0
    %130 = vmatpush1.xpose.msra.mxu0 0.0
    %131 = vmatprep.subr.mxu0 0.0
    %132 = vmatpush1.xpose.msra.mxu0 0.0
    %133 = vmatprep.subr.mxu0 0.0
    %134 = vmatpush1.xpose.msra.mxu0 0.0
    %135 = vmatprep.subr.mxu0 0.0
    %136 = vmatpush1.xpose.msra.mxu0 0.0
    %137 = vmatprep.subr.mxu0 0.0
    %138 = vmatpush1.xpose.msra.mxu0 0.0
    %139 = vmatprep.subr.mxu0 0.0
    %140 = vmatpush1.xpose.msra.mxu0 0.0
    %141 = vmatprep.subr.mxu0 0.0
    %142 = vmatpush1.xpose.msra.mxu0 0.0
    %143 = vmatprep.subr.mxu0 0.0
    %144 = vmatpush1.xpose.msra.mxu0 0.0
    %145 = vmatprep.subr.mxu0 0.0
    %146 = vmatpush1.xpose.msra.mxu0 0.0
    %147 = vmatprep.subr.mxu0 0.0
    %148 = vmatpush1.xpose.msra.mxu0 0.0
    %149 = vmatprep.subr.mxu0 0.0
    %150 = vmatpush1.xpose.msra.mxu0 0.0
    %151 = vmatprep.subr.mxu0 0.0
    %152 = vmatpush1.xpose.msra.mxu0 0.0
    %153 = vmatprep.subr.mxu0 0.0
    %154 = vmatpush1.xpose.msra.mxu0 0.0
    %155 = vmatprep.subr.mxu0 0.0
    %156 = vmatpush1.xpose.msra.mxu0 0.0
    %157 = vmatprep.subr.mxu0 0.0
    %158 = vmatpush1.xpose.msra.mxu0 0.0
    %159 = vmatprep.mubr.f32.mxu0 0.0
    %160 = vmatmul.mubr.f32.gmra.mrb[0].mxu0 %v42
    %v161 = vpop.f32.mrb[0].mxu0
    %v162 = vadd.f32 %v38, %v161
    %v163 = vpop.f32.mrb[0].mxu0
    %164 = vmatprep.mubr.f32.mxu0 0.0
    %165 = vmatmul.mubr.f32.gmra.mrb[0].mxu0 %v45
    %v166 = vpop.f32.mrb[0].mxu0
    %v167 = vadd.f32 %v38, %v166
    %v168 = vpop.f32.mrb[0].mxu0
    %169 = vdwg.mxu0
    %v170 = vmax.f32 %v162, 0.0
    %v171 = vmax.f32 %v167, 0.0
    %172 = vst [vmem:[#allocation2] sm:$0xff] %v170
    %173 = vst [vmem:[#allocation2 + $0x8] sm:$0xff] %v171
    // Predicated region
    $region14: #{tpu_custom_call.1} parent=1 // pred_check
      _
    $region15: #{tpu_custom_call.1} parent=1 // pred_check_branch
      %175 = sbr.rel (0) target = $region17
    $region16: #{tpu_custom_call.1} parent=1 // pred_region
      %s177 = ssub.s32 256, 256
      %178 = vsyncadd [#allocation3], %s177
      %s179 = sshll.u32 [#allocation2], 4
      %s180 = int_to_ptr.vmem [resolvable:$true] %s179
      %185 = dma.vmem_to_hbm [thread:$0]  %s180, 256, %s3, [#allocation3], 128, 128, 8
    $region17: #{tpu_custom_call.1} parent=1 // pred_fallthru
      _
    // Predicated region
    $region18: #{tpu_custom_call.1} parent=1 // pred_check
      _
    $region19: #{tpu_custom_call.1} parent=1 // pred_check_branch
      %187 = sbr.rel (0) target = $region21
    $region20: #{tpu_custom_call.1} parent=1 // pred_region
      %188 = dma.done [#allocation3], 256
    $region21: #{tpu_custom_call.1} parent=1 // pred_fallthru
      _
    %189 = vsyncpa [#allocation3], 1

</llo_original>
